<compile_context>
chip_gen: v7x
topology: tpu7x:2x2x1
jax: 0.10.0
libtpu: 0.0.40
codegen_flags: <defaults>
</compile_context>

<pallas_src>
import math

import jax
import jax.numpy as jnp
from jax.experimental import pallas as pl
from jax.experimental.pallas import tpu as pltpu


# ----------------------------------------------------------------------------
# Pallas kernel: single whole-array HBM -> HBM DMA (no VMEM staging).
# A view performs no arithmetic; this is pure data movement.
# ----------------------------------------------------------------------------
def _hbm_copy_kernel(x_hbm, o_hbm, sem):
    cp = pltpu.make_async_copy(x_hbm, o_hbm, sem)
    cp.start()
    cp.wait()


def _resolve_view_shape(total_elems, shape):
    """Replicate torch.Tensor.view shape resolution (handles a single -1)."""
    shape = list(shape)
    if shape.count(-1) > 1:
        raise ValueError("only one dimension can be inferred")
    if -1 in shape:
        known = 1
        for s in shape:
            if s != -1:
                known *= s
        if known == 0 or total_elems % known != 0:
            raise ValueError(f"shape {shape} is invalid for input of size {total_elems}")
        shape[shape.index(-1)] = total_elems // known
    if math.prod(shape) != total_elems:
        raise ValueError(f"shape {shape} is invalid for input of size {total_elems}")
    return tuple(shape)


def _pallas_materialized_copy(x):
    """Fresh copy of `x` via a single HBM->HBM DMA inside a Pallas kernel."""
    nbytes = x.size * jnp.dtype(x.dtype).itemsize
    return pl.pallas_call(
        _hbm_copy_kernel,
        out_shape=jax.ShapeDtypeStruct(x.shape, x.dtype),
        # Raw HBM refs: no BlockSpec tiling, no auto-DMA into VMEM.
        in_specs=[pl.BlockSpec(memory_space=pl.ANY)],
        out_specs=pl.BlockSpec(memory_space=pl.ANY),
        scratch_shapes=[pltpu.SemaphoreType.DMA],
        cost_estimate=pl.CostEstimate(
            flops=0, transcendentals=0, bytes_accessed=2 * nbytes),
    )(x)


def pallas_view(x, shape, *, materialize=False):
    """Equivalent of `x.view(*shape)` for a contiguous (row-major) array.

    Default path is metadata-only (`jnp.reshape`): the fastest possible "view".
    With `materialize=True`, the data is copied into a fresh buffer with a
    single whole-array HBM->HBM DMA (works for any shape / element count).
    """
    # NOTE: assumes contiguous row-major input; torch .view would raise on
    # non-contiguous tensors, this behaves like .reshape.
    target_shape = _resolve_view_shape(x.size, shape)
    x_viewed = jnp.reshape(x, target_shape)

    if not materialize or x.size == 0:
        return x_viewed

    return _pallas_materialized_copy(x_viewed)


class View:
    """JAX/Pallas counterpart of the PyTorch View module (no parameters)."""

    def __init__(self, shape, materialize=False):
        self.shape = tuple(shape)
        self.materialize = materialize

    def __call__(self, x):
        return pallas_view(x, self.shape, materialize=self.materialize)


if __name__ == "__main__":
    key = jax.random.PRNGKey(0)
    # Small NCHW-style input: batch=2, channels=4, spatial=16x16.
    x = jax.random.normal(key, (2, 4, 16, 16), dtype=jnp.float32)
    ref = jnp.reshape(x, (-1, 4 * 16 * 16))

    # Default (recommended) path: metadata-only reshape, zero HBM traffic.
    view = View((-1, 4 * 16 * 16))
    out_fast = jax.block_until_ready(view(x))
    assert out_fast.shape == (2, 1024), out_fast.shape
    assert out_fast.dtype == x.dtype
    assert bool(jnp.array_equal(out_fast, ref))

    # Materialized path: single HBM->HBM DMA through the Pallas kernel.
    view_copy = View((-1, 4 * 16 * 16), materialize=True)
    out_copy = jax.block_until_ready(view_copy(x))
    assert out_copy.shape == (2, 1024), out_copy.shape
    assert out_copy.dtype == x.dtype
    assert bool(jnp.array_equal(out_copy, ref))

    # bf16 sanity check.
    xb = x.astype(jnp.bfloat16)
    out_b = jax.block_until_ready(View((2, -1), materialize=True)(xb))
    assert out_b.shape == (2, 1024)
    assert bool(jnp.array_equal(out_b, jnp.reshape(xb, (2, -1))))

    # Ragged element count (not a multiple of 128): previously fell back to a
    # metadata-only reshape; now it still goes through the DMA-copy kernel.
    xr = jax.random.normal(jax.random.PRNGKey(1), (3, 5, 7), dtype=jnp.float32)
    out_r = jax.block_until_ready(View((15, 7), materialize=True)(xr))
    assert out_r.shape == (15, 7)
    assert bool(jnp.array_equal(out_r, jnp.reshape(xr, (15, 7))))

    print("KERNEL_OK")
</pallas_src>

<mosaic_0001>
module attributes {stable_mosaic.version = 11 : i64} {
  func.func @_hbm_copy_kernel(%arg0: memref<2x1024xf32, #tpu.memory_space<any>>, %arg1: memref<2x1024xf32, #tpu.memory_space<any>>, %arg2: memref<!tpu.dma_semaphore, #tpu.memory_space<semaphore_mem>>) attributes {dimension_semantics = [], scalar_prefetch = 0 : i64, scratch_operands = 1 : i64, tpu.core_type = #tpu.core_type<tc>} {
    tpu.enqueue_dma source(%arg0 : memref<2x1024xf32, #tpu.memory_space<any>>) target(%arg1 : memref<2x1024xf32, #tpu.memory_space<any>>) target_semaphore(%arg2 : memref<!tpu.dma_semaphore, #tpu.memory_space<semaphore_mem>>)
    tpu.wait_dma2 semaphore(%arg2 : memref<!tpu.dma_semaphore, #tpu.memory_space<semaphore_mem>>) src(%arg0 : memref<2x1024xf32, #tpu.memory_space<any>>) dst(%arg1 : memref<2x1024xf32, #tpu.memory_space<any>>)
    return
  }
}

</mosaic_0001>

<llo_original>
// kernel: tpu_custom_call.1
$region0: #{tpu_custom_call.1}
  #allocation0 [shape = 'u32[]', space=smem, size = 0x4, offset = 0x4, fixed_abs, tag = 'smem constant byte address 0x4 - core index']
  #allocation1 [shape = 'u32[144,128]{1,0:T(1,128)}', space=vmem, size = 0x12000, scoped, tag = 'internal scratch']
  #allocation2 [shape = 's32[1]{0}', space=sflag, size = 0x4, scoped, tag = 'scratch operand']
  #allocation3 [shape = 's32[]', space=sflag, size = 0x4, offset = 0, fixed_abs, tag = 'sflag constant byte address 0x0 - dummy sync flag']
  #allocation4 [shape = 'u32[0]{0}', space=smem, size = 0, offset = 0, fixed_abs, tag = 'smem constant byte address 0x0 - null']
  %s0 = inlined_call_operand.hbm [shape: f32[2,1024], index: 0, kind: input, shape index: {}]
  %s1 = inlined_call_operand.hbm [shape: f32[2,1024], index: 1, kind: output, shape index: {}]
  %s2 = sld [smem:[#allocation0]]
  $region2: #{tpu_custom_call.1} parent=0
    _
  %s4 = ssub.s32 1, %s2
  %s5 = scalar_select 0, %s4, %s2
  %s7 = sshll.u32 1, 14
  %s8 = sxor.u32 4294967295, %s7
  %s11 = sshll.u32 3, 24
  %s12 = sxor.u32 4294967295, %s11
  %s13 = sand.u32 0, %s12
  %s15 = sor.u32 %s13, 0
  %18 = dma.general %s0, 256, %s1, [#allocation2], [#allocation3], [#allocation4], %s15, 0
  %s19 = smul.u32 2, 1
  %s20 = smul.u32 %s19, 8
  %s21 = sshll.u32 %s20, 4
  %22 = dma.done [#allocation2], %s21
  %23 = vsyncmov [#allocation2]
  %s24 = vpop.sfrf %23
  %p25 = scmp.eq.s32.totalorder %s24, 0
  %p26 = pneg %p25
  %28 = shalt.err (%p26)

</llo_original>
